<compile_context>
chip_gen: v7x
topology: tpu7x:2x2x1
jax: 0.10.0
libtpu: 0.0.40
codegen_flags: <defaults>
</compile_context>

<pallas_src>
import functools
import math

import jax
import jax.numpy as jnp
from jax.experimental import pallas as pl
from jax.experimental.pallas import tpu as pltpu


def _phases(pos, wp):
    """(L, P) positions x (P, D) weights -> (L, D) phases (VPU broadcasts)."""
    P = wp.shape[0]
    acc = pos[:, 0:1] * wp[0:1, :]
    for p in range(1, P):
        acc = acc + pos[:, p:p + 1] * wp[p:p + 1, :]
    return acc


def _kv_kernel(k_in_ref, wk_ref, wv_ref, wp_ref, kpos_ref, kv_ref):
    """Pass 1: accumulate KV3 = [k*cos|k*sin|k]^T @ [v|1] over key tiles."""
    ki = pl.program_id(1)

    contract_last = (((1,), (1,)), ((), ()))      # x @ W^T (torch Linear)
    contract_first = (((0,), (0,)), ((), ()))     # A^T @ B

    x_k = k_in_ref[...]                                              # (tk, D)
    k_all = jnp.exp(jax.lax.dot_general(
        x_k.astype(jnp.bfloat16), wk_ref[...], contract_last,
        preferred_element_type=jnp.float32))                         # (tk, D)
    v_all = jax.lax.dot_general(
        x_k.astype(jnp.bfloat16), wv_ref[...], contract_last,
        preferred_element_type=jnp.float32)                          # (tk, D)
    pk_all = _phases(kpos_ref[...], wp_ref[...])                     # (tk, D)

    k3 = jnp.concatenate(
        [k_all * jnp.cos(pk_all), k_all * jnp.sin(pk_all), k_all], axis=1)  # (tk, 3D)
    v_aug = jnp.concatenate(
        [v_all, jnp.ones((x_k.shape[0], 1), jnp.float32)], axis=1)          # (tk, D+1)

    kv = jax.lax.dot_general(
        k3.astype(jnp.bfloat16), v_aug.astype(jnp.bfloat16),
        contract_first, preferred_element_type=jnp.float32)          # (3D, D+1)

    @pl.when(ki == 0)
    def _init():
        kv_ref[...] = jnp.zeros_like(kv_ref)

    kv_ref[...] += kv

    # TODO(synk): mask_future=True needs a cumulative (prefix-sum) KV variant;
    # only the unmasked linear-complexity path is fused here.


def _apply_kernel(q_in_ref, wq_ref, wp_ref, bp_ref, qpos_ref, kv_ref, out_ref,
                  *, n_heads, proj_dim):
    """Pass 2: project query tile, apply masked KV, write (tq, D) output."""
    H, d = n_heads, proj_dim
    D = H * d

    contract_last = (((1,), (1,)), ((), ()))

    x_q = q_in_ref[...]                                              # (tq, D)
    q_all = jnp.exp(jax.lax.dot_general(
        x_q.astype(jnp.bfloat16), wq_ref[...], contract_last,
        preferred_element_type=jnp.float32))                         # (tq, D)
    pq_all = _phases(qpos_ref[...], wp_ref[...]) + bp_ref[...]       # (tq, D)

    q3 = jnp.concatenate(
        [q_all * jnp.cos(pq_all), q_all * jnp.sin(pq_all), q_all], axis=1)  # (tq, 3D)

    # Head block-diagonal mask (3D, D): rows are [cos | sin | raw] head blocks.
    row_head = (jax.lax.broadcasted_iota(jnp.int32, (3 * D, D), 0) % D) // d
    col_head = jax.lax.broadcasted_iota(jnp.int32, (3 * D, D), 1) // d
    mask = (row_head == col_head).astype(jnp.float32)

    kv = kv_ref[...]                                                 # (3D, D+1)
    w_num = kv[:, :D] * mask                                         # (3D, D)
    w_den = kv[:, D:D + 1] * mask                                    # (3D, D)
    w = jnp.concatenate([w_num, w_den], axis=1)                      # (3D, 2D)

    r = jnp.dot(q3.astype(jnp.bfloat16), w.astype(jnp.bfloat16),
                preferred_element_type=jnp.float32)                  # (tq, 2D)
    num = r[:, :D]
    den = r[:, D:]
    out_ref[...] = (num * pl.reciprocal(den + 1e-8, approx=True)
                    ).astype(out_ref.dtype)


def _pick_tile(length, target):
    """Largest multiple-of-8 tile <= target dividing length (else full length)."""
    if length <= target:
        return length
    for t in range(target, 7, -8):
        if length % t == 0:
            return t
    return length


def fourier_kernel_attention(query, key, Wq, Wk, Wv, pos_weight, pos_bias,
                             query_positions=None, key_positions=None,
                             block_q=1024, block_k=1024):
    """JAX wrapper reproducing FourrierKernelAttention.forward (defaults)."""
    N, Lq, D = query.shape
    _, Lk, _ = key.shape
    H, P, d = pos_weight.shape
    assert D == H * d

    if query_positions is None:
        query_positions = jnp.broadcast_to(
            jnp.arange(Lq, dtype=jnp.float32).reshape(1, Lq, 1), (N, Lq, P))
    if key_positions is None:
        key_positions = jnp.broadcast_to(
            jnp.arange(Lk, dtype=jnp.float32).reshape(1, Lk, 1), (N, Lk, P))
    query_positions = query_positions.astype(jnp.float32)
    key_positions = key_positions.astype(jnp.float32)

    # (H, P, d) -> (P, H*d): head-major columns matching the projected
    # activation layout; (H, d) bias -> (1, H*d).  Tiny, done once.
    wp_flat = pos_weight.transpose(1, 0, 2).reshape(P, D).astype(jnp.float32)
    bias_flat = pos_bias.reshape(1, D).astype(jnp.float32)
    wq_bf = Wq.astype(jnp.bfloat16)
    wk_bf = Wk.astype(jnp.bfloat16)
    wv_bf = Wv.astype(jnp.bfloat16)

    tq = _pick_tile(Lq, block_q)
    tk = _pick_tile(Lk, block_k)
    assert Lq % tq == 0 and Lk % tk == 0

    # ---------------- pass 1: per-batch KV3 (3D, D+1) ----------------
    kv = pl.pallas_call(
        _kv_kernel,
        out_shape=jax.ShapeDtypeStruct((N, 3 * D, D + 1), jnp.float32),
        grid_spec=pltpu.PrefetchScalarGridSpec(
            num_scalar_prefetch=0,
            grid=(N, Lk // tk),
            in_specs=[
                pl.BlockSpec((pl.Squeezed(), tk, D), lambda n, ki: (n, ki, 0)),  # key
                pl.BlockSpec((D, D), lambda n, ki: (0, 0)),                      # Wk
                pl.BlockSpec((D, D), lambda n, ki: (0, 0)),                      # Wv
                pl.BlockSpec((P, D), lambda n, ki: (0, 0)),                      # pos weight
                pl.BlockSpec((pl.Squeezed(), tk, P), lambda n, ki: (n, ki, 0)),  # k positions
            ],
            out_specs=pl.BlockSpec((pl.Squeezed(), 3 * D, D + 1),
                                   lambda n, ki: (n, 0, 0)),
        ),
        compiler_params=pltpu.CompilerParams(
            dimension_semantics=("parallel", "arbitrary")),
    )(key, wk_bf, wv_bf, wp_flat, key_positions)

    # ---------------- pass 2: apply KV to query tiles ----------------
    kernel2 = functools.partial(_apply_kernel, n_heads=H, proj_dim=d)
    out = pl.pallas_call(
        kernel2,
        out_shape=jax.ShapeDtypeStruct((N, Lq, D), query.dtype),
        grid_spec=pltpu.PrefetchScalarGridSpec(
            num_scalar_prefetch=0,
            grid=(N, Lq // tq),
            in_specs=[
                pl.BlockSpec((pl.Squeezed(), tq, D), lambda n, qi: (n, qi, 0)),  # query
                pl.BlockSpec((D, D), lambda n, qi: (0, 0)),                      # Wq
                pl.BlockSpec((P, D), lambda n, qi: (0, 0)),                      # pos weight
                pl.BlockSpec((1, D), lambda n, qi: (0, 0)),                      # pos bias
                pl.BlockSpec((pl.Squeezed(), tq, P), lambda n, qi: (n, qi, 0)),  # q positions
                pl.BlockSpec((pl.Squeezed(), 3 * D, D + 1),
                             lambda n, qi: (n, 0, 0)),                           # KV
            ],
            out_specs=pl.BlockSpec((pl.Squeezed(), tq, D),
                                   lambda n, qi: (n, qi, 0)),
        ),
        compiler_params=pltpu.CompilerParams(
            dimension_semantics=("parallel", "parallel")),
    )(query, wq_bf, wp_flat, bias_flat, query_positions, kv)
    return out


def _reference(query, key, Wq, Wk, Wv, pos_weight, pos_bias):
    """Pure-JAX mirror of the PyTorch forward (same defaults), for validation."""
    N, Lq, D = query.shape
    _, Lk, _ = key.shape
    H, P, d = pos_weight.shape

    q = jnp.exp((query @ Wq.T).reshape(N, Lq, H, d)).transpose(0, 2, 1, 3)
    k = jnp.exp((key @ Wk.T).reshape(N, Lk, H, d)).transpose(0, 2, 1, 3)
    v = (key @ Wv.T).reshape(N, Lk, H, d).transpose(0, 2, 1, 3)

    qpos = jnp.broadcast_to(jnp.arange(Lq, dtype=query.dtype).reshape(1, Lq, 1),
                            (N, Lq, P))
    kpos = jnp.broadcast_to(jnp.arange(Lk, dtype=key.dtype).reshape(1, Lk, 1),
                            (N, Lk, P))
    pq = jnp.einsum('nlp,hpd->nhld', qpos, pos_weight) + pos_bias.reshape(1, H, 1, d)
    pk = jnp.einsum('nlp,hpd->nhld', kpos, pos_weight)

    def comp(qx, kx, vx):
        if vx is None:
            return jnp.einsum('nhqd,nhd->nhq', qx, kx.sum(2))
        right = jnp.einsum('nhkd,nhkv->nhdv', kx, vx)
        return jnp.einsum('nhqd,nhdv->nhqv', qx, right)

    qc, qs = q * jnp.cos(pq), q * jnp.sin(pq)
    kc, ks = k * jnp.cos(pk), k * jnp.sin(pk)
    num = comp(qc, kc, v) + comp(qs, ks, v) + comp(q, k, v)
    den = comp(qc, kc, None) + comp(qs, ks, None) + comp(q, k, None)
    att = num / (den + 1e-8)[..., None]
    return att.transpose(0, 2, 1, 3).reshape(N, Lq, D)


if __name__ == "__main__":
    # Module hyper-parameters
    n_heads = 2
    projection_dim = 32
    position_dimension = 1
    D = n_heads * projection_dim        # 64

    # Input shapes
    N, Lq, Lk = 2, 16, 16

    root = jax.random.PRNGKey(0)
    kq, kk, kwq, kwk, kwv, kpw, kpb = jax.random.split(root, 7)

    query = jax.random.normal(kq, (N, Lq, D), dtype=jnp.float32)
    key = jax.random.normal(kk, (N, Lk, D), dtype=jnp.float32)

    # torch.nn.Linear(dim, dim, bias=False) weights: shape (out, in), y = x @ W^T
    bound = 1.0 / math.sqrt(D)
    Wq = jax.random.uniform(kwq, (D, D), jnp.float32, -bound, bound)
    Wk = jax.random.uniform(kwk, (D, D), jnp.float32, -bound, bound)
    Wv = jax.random.uniform(kwv, (D, D), jnp.float32, -bound, bound)

    # position_weight: (H, P, d) in [-1, 1);  position_bias: (H, d) in [-pi, pi)
    pos_weight = jax.random.uniform(kpw, (n_heads, position_dimension, projection_dim),
                                    jnp.float32, -1.0, 1.0)
    pos_bias = jax.random.uniform(kpb, (n_heads, projection_dim),
                                  jnp.float32, -math.pi, math.pi)

    ref = _reference(query, key, Wq, Wk, Wv, pos_weight, pos_bias)

    # Single-tile path (tq = Lq, tk = Lk)
    out = fourier_kernel_attention(query, key, Wq, Wk, Wv, pos_weight, pos_bias)
    out = jax.block_until_ready(out)
    assert out.shape == (N, Lq, D), out.shape
    assert jnp.allclose(out, ref, rtol=3e-2, atol=3e-2), \
        float(jnp.max(jnp.abs(out - ref)))

    # Multi-tile path (exercises the Lk reduction accumulator + Lq tiling)
    out_tiled = fourier_kernel_attention(query, key, Wq, Wk, Wv, pos_weight,
                                         pos_bias, block_q=8, block_k=8)
    out_tiled = jax.block_until_ready(out_tiled)
    assert jnp.allclose(out_tiled, ref, rtol=3e-2, atol=3e-2), \
        float(jnp.max(jnp.abs(out_tiled - ref)))

    print("KERNEL_OK")
</pallas_src>

<mosaic_0001>
module attributes {stable_mosaic.version = 11 : i64} {
  func.func @_kv_kernel(%arg0: i32, %arg1: i32, %arg2: memref<1x16x64xf32, #tpu.memory_space<vmem>>, %arg3: memref<64x64xbf16, #tpu.memory_space<vmem>>, %arg4: memref<64x64xbf16, #tpu.memory_space<vmem>>, %arg5: memref<1x64xf32, #tpu.memory_space<vmem>>, %arg6: memref<1x16x1xf32, #tpu.memory_space<vmem>>, %arg7: memref<1x192x65xf32, #tpu.memory_space<vmem>>) attributes {dimension_semantics = [#tpu.dimension_semantics<parallel>, #tpu.dimension_semantics<arbitrary>], iteration_bounds = array<i64: 2, 1>, scalar_prefetch = 0 : i64, scratch_operands = 0 : i64, tpu.core_type = #tpu.core_type<tc>, window_params = [{transform_indices = @transform_0, window_bounds = array<i64: 1, 16, 64>}, {pipeline_mode = #tpu.pipeline_mode<synchronous>, transform_indices = @transform_1, window_bounds = array<i64: 64, 64>}, {pipeline_mode = #tpu.pipeline_mode<synchronous>, transform_indices = @transform_2, window_bounds = array<i64: 64, 64>}, {pipeline_mode = #tpu.pipeline_mode<synchronous>, transform_indices = @transform_3, window_bounds = array<i64: 1, 64>}, {transform_indices = @transform_4, window_bounds = array<i64: 1, 16, 1>}, {transform_indices = @transform_5, window_bounds = array<i64: 1, 192, 65>}]} {
    %c0 = arith.constant 0 : index
    %c0_0 = arith.constant 0 : index
    %c0_1 = arith.constant 0 : index
    %0 = vector.load %arg2[%c0, %c0_0, %c0_1] : memref<1x16x64xf32, #tpu.memory_space<vmem>>, vector<1x16x64xf32>
    %1 = vector.shape_cast %0 : vector<1x16x64xf32> to vector<16x64xf32>
    %2 = arith.truncf %1 : vector<16x64xf32> to vector<16x64xbf16>
    %c0_2 = arith.constant 0 : index
    %c0_3 = arith.constant 0 : index
    %3 = vector.load %arg3[%c0_2, %c0_3] : memref<64x64xbf16, #tpu.memory_space<vmem>>, vector<64x64xbf16>
    %cst = arith.constant dense<0.000000e+00> : vector<16x64xf32>
    %4 = tpu.matmul %2, %3, %cst {dimension_numbers = #tpu.dot_dimension_numbers<[1], [1], [0], [0], [0, 0, 1, 0], [], []>} : vector<16x64xbf16>, vector<64x64xbf16>, vector<16x64xf32> -> vector<16x64xf32>
    %5 = math.exp %4 : vector<16x64xf32>
    %6 = arith.truncf %1 : vector<16x64xf32> to vector<16x64xbf16>
    %c0_4 = arith.constant 0 : index
    %c0_5 = arith.constant 0 : index
    %7 = vector.load %arg4[%c0_4, %c0_5] : memref<64x64xbf16, #tpu.memory_space<vmem>>, vector<64x64xbf16>
    %cst_6 = arith.constant dense<0.000000e+00> : vector<16x64xf32>
    %8 = tpu.matmul %6, %7, %cst_6 {dimension_numbers = #tpu.dot_dimension_numbers<[1], [1], [0], [0], [0, 0, 1, 0], [], []>} : vector<16x64xbf16>, vector<64x64xbf16>, vector<16x64xf32> -> vector<16x64xf32>
    %c0_7 = arith.constant 0 : index
    %c0_8 = arith.constant 0 : index
    %c0_9 = arith.constant 0 : index
    %9 = vector.load %arg6[%c0_7, %c0_8, %c0_9] : memref<1x16x1xf32, #tpu.memory_space<vmem>>, vector<1x16x1xf32>
    %10 = vector.shape_cast %9 : vector<1x16x1xf32> to vector<16x1xf32>
    %c0_10 = arith.constant 0 : index
    %c0_11 = arith.constant 0 : index
    %11 = vector.load %arg5[%c0_10, %c0_11] : memref<1x64xf32, #tpu.memory_space<vmem>>, vector<1x64xf32>
    %12 = vector.broadcast %10 : vector<16x1xf32> to vector<16x64xf32>
    %13 = vector.broadcast %11 : vector<1x64xf32> to vector<16x64xf32>
    %14 = arith.mulf %12, %13 : vector<16x64xf32>
    %15 = math.cos %14 : vector<16x64xf32>
    %16 = arith.mulf %5, %15 : vector<16x64xf32>
    %17 = math.sin %14 : vector<16x64xf32>
    %18 = arith.mulf %5, %17 : vector<16x64xf32>
    %19 = tpu.concatenate %16, %18, %5 in 1 : vector<16x64xf32>, vector<16x64xf32>, vector<16x64xf32> -> vector<16x192xf32>
    %cst_12 = arith.constant 1.000000e+00 : f32
    %20 = vector.broadcast %cst_12 : f32 to vector<16x1xf32>
    %21 = tpu.concatenate %8, %20 in 1 : vector<16x64xf32>, vector<16x1xf32> -> vector<16x65xf32>
    %22 = arith.truncf %19 : vector<16x192xf32> to vector<16x192xbf16>
    %23 = arith.truncf %21 : vector<16x65xf32> to vector<16x65xbf16>
    %cst_13 = arith.constant dense<0.000000e+00> : vector<192x65xf32>
    %24 = tpu.matmul %22, %23, %cst_13 {dimension_numbers = #tpu.dot_dimension_numbers<[0], [0], [1], [1], [0, 1, 1, 1], [], []>} : vector<16x192xbf16>, vector<16x65xbf16>, vector<192x65xf32> -> vector<192x65xf32>
    %c0_i32 = arith.constant 0 : i32
    %25 = arith.cmpi eq, %arg1, %c0_i32 : i32
    %26 = arith.extui %25 : i1 to i32
    %c0_i32_14 = arith.constant 0 : i32
    %27 = arith.cmpi ne, %26, %c0_i32_14 : i32
    scf.if %27 {
      %cst_21 = arith.constant 0.000000e+00 : f32
      %34 = vector.broadcast %cst_21 : f32 to vector<192x65xf32>
      %c0_22 = arith.constant 0 : index
      %c0_23 = arith.constant 0 : index
      %c0_24 = arith.constant 0 : index
      %35 = vector.load %arg7[%c0_22, %c0_23, %c0_24] : memref<1x192x65xf32, #tpu.memory_space<vmem>>, vector<1x192x65xf32>
      %36 = vector.shape_cast %35 : vector<1x192x65xf32> to vector<192x65xf32>
      %37 = vector.shape_cast %34 : vector<192x65xf32> to vector<1x192x65xf32>
      tpu.vector_store %arg7[%c0_22, %c0_23, %c0_24], %37 {strides = array<i32>} : memref<1x192x65xf32, #tpu.memory_space<vmem>>, vector<1x192x65xf32>,
    } else {
    }
    %c0_15 = arith.constant 0 : index
    %c0_16 = arith.constant 0 : index
    %c0_17 = arith.constant 0 : index
    %28 = vector.load %arg7[%c0_15, %c0_16, %c0_17] : memref<1x192x65xf32, #tpu.memory_space<vmem>>, vector<1x192x65xf32>
    %29 = vector.shape_cast %28 : vector<1x192x65xf32> to vector<192x65xf32>
    %30 = arith.addf %29, %24 : vector<192x65xf32>
    %c0_18 = arith.constant 0 : index
    %c0_19 = arith.constant 0 : index
    %c0_20 = arith.constant 0 : index
    %31 = vector.load %arg7[%c0_18, %c0_19, %c0_20] : memref<1x192x65xf32, #tpu.memory_space<vmem>>, vector<1x192x65xf32>
    %32 = vector.shape_cast %31 : vector<1x192x65xf32> to vector<192x65xf32>
    %33 = vector.shape_cast %30 : vector<192x65xf32> to vector<1x192x65xf32>
    tpu.vector_store %arg7[%c0_18, %c0_19, %c0_20], %33 {strides = array<i32>} : memref<1x192x65xf32, #tpu.memory_space<vmem>>, vector<1x192x65xf32>,
    return
  }
  func.func @transform_0(%arg0: i32, %arg1: i32) -> (i32, i32, i32) {
    %c0_i32 = arith.constant 0 : i32
    %c0_i32_0 = arith.constant 0 : i32
    return %arg0, %arg1, %c0_i32 : i32, i32, i32
  }
  func.func @transform_1(%arg0: i32, %arg1: i32) -> (i32, i32) {
    %c0_i32 = arith.constant 0 : i32
    %c0_i32_0 = arith.constant 0 : i32
    %c0_i32_1 = arith.constant 0 : i32
    return %c0_i32, %c0_i32_0 : i32, i32
  }
  func.func @transform_2(%arg0: i32, %arg1: i32) -> (i32, i32) {
    %c0_i32 = arith.constant 0 : i32
    %c0_i32_0 = arith.constant 0 : i32
    %c0_i32_1 = arith.constant 0 : i32
    return %c0_i32, %c0_i32_0 : i32, i32
  }
  func.func @transform_3(%arg0: i32, %arg1: i32) -> (i32, i32) {
    %c0_i32 = arith.constant 0 : i32
    %c0_i32_0 = arith.constant 0 : i32
    %c0_i32_1 = arith.constant 0 : i32
    return %c0_i32, %c0_i32_0 : i32, i32
  }
  func.func @transform_4(%arg0: i32, %arg1: i32) -> (i32, i32, i32) {
    %c0_i32 = arith.constant 0 : i32
    %c0_i32_0 = arith.constant 0 : i32
    return %arg0, %arg1, %c0_i32 : i32, i32, i32
  }
  func.func @transform_5(%arg0: i32, %arg1: i32) -> (i32, i32, i32) {
    %c0_i32 = arith.constant 0 : i32
    %c0_i32_0 = arith.constant 0 : i32
    %c0_i32_1 = arith.constant 0 : i32
    return %arg0, %c0_i32, %c0_i32_0 : i32, i32, i32
  }
}

</mosaic_0001>

<llo_original>
// kernel: tpu_custom_call.1
$region0: #{tpu_custom_call.1}
  #allocation0 [shape = 'u32[]', space=smem, size = 0x4, offset = 0x4, fixed_abs, tag = 'smem constant byte address 0x4 - core index']
  #allocation1 [shape = 'u32[144,128]{1,0:T(1,128)}', space=vmem, size = 0x12000, scoped, tag = 'internal scratch']
  %s0 = inlined_call_operand.vmem [shape: f32[2,16,64], index: 0, kind: input, shape index: {}]
  %s1 = inlined_call_operand.hbm [shape: bf16[64,64], index: 1, kind: input, shape index: {}]
  %s2 = inlined_call_operand.hbm [shape: bf16[64,64], index: 2, kind: input, shape index: {}]
  %s3 = inlined_call_operand.vmem [shape: f32[1,64], index: 3, kind: input, shape index: {}]
  %s4 = inlined_call_operand.vmem [shape: f32[2,16,1], index: 4, kind: input, shape index: {}]
  %s5 = inlined_call_operand.vmem [shape: f32[2,192,65], index: 5, kind: output, shape index: {}]
  %s6 = sld [smem:[#allocation0]]
  $region65: #{tpu_custom_call.1} parent=0
    _
  %s8 = ssub.s32 1, %s6
  %s9 = scalar_select 0, %s8, %s6
  $region1: #{tpu_custom_call.1} parent=0
    #allocation2 [shape = 'u8[16384]{0}', space=vmem, size = 0x4000, scoped, tag = 'input window, operand 1, single buffered']
    #allocation3 [shape = 's32[2]{0}', space=sflag, size = 0x8, scoped, tag = 'scoped memory for tpu_custom_call.1']
    #allocation4 [shape = 'u8[16384]{0}', space=vmem, size = 0x4000, scoped, tag = 'input window, operand 2, single buffered']
    #allocation5 [shape = 's32[1]{0}', space=sflag, size = 0x4, scoped, tag = 'scoped memory for tpu_custom_call.1']
    %10 = vsyncpa [#allocation3], 0
    %11 = vsyncpa [#allocation5], 0
    loop: start=0, step=1, limit=4
    $region2: #{tpu_custom_call.1} parent=1 // loop_pre_header
      _
    $region3: #{tpu_custom_call.1} parent=1 // loop_header
      %s13 = sphi 0, %s17
      %p14 = scmp.ge.s32.totalorder %s13, 4
      %s20 = sphi 0, %s32
      %s21 = sphi 0, %s28
      %s22 = sphi 0, %s20
      %s23 = sphi 0, %s21
      %s24 = sphi 0, %s22
      %s25 = sphi 0, %s23
      %s37 = sphi 0, %s39
      %s40 = sphi 0, %s37
      %s41 = sphi 0, %s40
      %s57 = sphi 0, %s41
      %s61 = sphi 0, %s61
      %s63 = sphi 0, %s61
      %s64 = sphi 0, %s63
      %s78 = sphi 0, %s64
      %s82 = sphi 0, %s82
      %s84 = sphi 0, %s82
      %s85 = sphi 0, %s84
      %s99 = sphi 0, %s85
      %s103 = sphi 0, %s103
      %s105 = sphi 0, %s103
      %s106 = sphi 0, %s105
      %s120 = sphi 0, %s106
      %s128 = sphi 0, %s130
      %s131 = sphi 0, %s128
      %s132 = sphi 0, %s131
      %s148 = sphi 0, %s132
      %s154 = sphi 0, %s156
      %s157 = sphi 0, %s154
      %s158 = sphi 0, %s157
      %s174 = sphi 0, %s158
    $region4: #{tpu_custom_call.1} parent=1 // loop_header_branch
      %16 = sbr.rel (%p14) target = $region8
    $region5: #{tpu_custom_call.1} parent=1 // loop_body
      %s18 = ssub.s32 %s13, 1
      %s19 = ssub.s32 %s13, 2
      %s26 = sadd.s32 1, %s21
      %p27 = scmp.ge.s32.totalorder %s26, 1
      %s28 = scalar_select %p27, 0, %s26
      %s29 = sadd.s32 1, %s20
      %s30 = scalar_select %p27, %s29, %s20
      %p31 = scmp.ge.s32.totalorder %s30, 2
      %s32 = scalar_select %p31, 0, %s30
      %s33 = ssub.s32 %s20, %s32
      %s34 = ssub.s32 %s21, %s28
      %s35 = sor.u32 %s33, %s34
      %p36 = scmp.eq.s32.totalorder %s35, 0
      %s38 = sadd.s32 %s37, 1
      %s39 = scalar_select %p36, %s37, %s38
      %p42 = pneg %p36
      %p43 = scmp.eq.s32.totalorder %s13, 1
      %p44 = por %p42, %p43
      %p45 = scmp.ne.s32.totalorder %s37, %s40
      %p46 = scmp.eq.s32.totalorder %s13, 0
      %p47 = por %p45, %p46
      %p48 = scmp.ne.s32.totalorder %s37, %s40
      %p49 = scmp.eq.s32.totalorder %s18, 1
      %p50 = por %p48, %p49
      %p51 = scmp.ne.s32.totalorder %s40, %s41
      %p52 = scmp.eq.s32.totalorder %s18, 0
      %p53 = por %p51, %p52
      %p54 = scmp.ne.s32.totalorder %s40, %s41
      %p55 = scmp.eq.s32.totalorder %s19, 1
      %p56 = por %p54, %p55
      %p58 = scmp.ne.s32.totalorder %s41, %s57
      %p59 = scmp.eq.s32.totalorder %s19, 0
      %p60 = por %p58, %p59
      %s62 = sadd.s32 %s61, 1
      %p65 = scmp.eq.s32.totalorder %s13, 1
      %p66 = scmp.ne.s32.totalorder %s61, %s63
      %p67 = scmp.eq.s32.totalorder %s13, 0
      %p68 = por %p66, %p67
      %p69 = scmp.ne.s32.totalorder %s61, %s63
      %p70 = scmp.eq.s32.totalorder %s18, 1
      %p71 = por %p69, %p70
      %p72 = scmp.ne.s32.totalorder %s63, %s64
      %p73 = scmp.eq.s32.totalorder %s18, 0
      %p74 = por %p72, %p73
      %p75 = scmp.ne.s32.totalorder %s63, %s64
      %p76 = scmp.eq.s32.totalorder %s19, 1
      %p77 = por %p75, %p76
      %p79 = scmp.ne.s32.totalorder %s64, %s78
      %p80 = scmp.eq.s32.totalorder %s19, 0
      %p81 = por %p79, %p80
      %s83 = sadd.s32 %s82, 1
      %p86 = scmp.eq.s32.totalorder %s13, 1
      %p87 = scmp.ne.s32.totalorder %s82, %s84
      %p88 = scmp.eq.s32.totalorder %s13, 0
      %p89 = por %p87, %p88
      %p90 = scmp.ne.s32.totalorder %s82, %s84
      %p91 = scmp.eq.s32.totalorder %s18, 1
      %p92 = por %p90, %p91
      %p93 = scmp.ne.s32.totalorder %s84, %s85
      %p94 = scmp.eq.s32.totalorder %s18, 0
      %p95 = por %p93, %p94
      %p96 = scmp.ne.s32.totalorder %s84, %s85
      %p97 = scmp.eq.s32.totalorder %s19, 1
      %p98 = por %p96, %p97
      %p100 = scmp.ne.s32.totalorder %s85, %s99
      %p101 = scmp.eq.s32.totalorder %s19, 0
      %p102 = por %p100, %p101
      %s104 = sadd.s32 %s103, 1
      %p107 = scmp.eq.s32.totalorder %s13, 1
      %p108 = scmp.ne.s32.totalorder %s103, %s105
      %p109 = scmp.eq.s32.totalorder %s13, 0
      %p110 = por %p108, %p109
      %p111 = scmp.ne.s32.totalorder %s103, %s105
      %p112 = scmp.eq.s32.totalorder %s18, 1
      %p113 = por %p111, %p112
      %p114 = scmp.ne.s32.totalorder %s105, %s106
      %p115 = scmp.eq.s32.totalorder %s18, 0
      %p116 = por %p114, %p115
      %p117 = scmp.ne.s32.totalorder %s105, %s106
      %p118 = scmp.eq.s32.totalorder %s19, 1
      %p119 = por %p117, %p118
      %p121 = scmp.ne.s32.totalorder %s106, %s120
      %p122 = scmp.eq.s32.totalorder %s19, 0
      %p123 = por %p121, %p122
      %s124 = ssub.s32 %s20, %s32
      %s125 = ssub.s32 %s21, %s28
      %s126 = sor.u32 %s124, %s125
      %p127 = scmp.eq.s32.totalorder %s126, 0
      %s129 = sadd.s32 %s128, 1
      %s130 = scalar_select %p127, %s128, %s129
      %p133 = pneg %p127
      %p134 = scmp.eq.s32.totalorder %s13, 1
      %p135 = por %p133, %p134
      %p136 = scmp.ne.s32.totalorder %s128, %s131
      %p137 = scmp.eq.s32.totalorder %s13, 0
      %p138 = por %p136, %p137
      %p139 = scmp.ne.s32.totalorder %s128, %s131
      %p140 = scmp.eq.s32.totalorder %s18, 1
      %p141 = por %p139, %p140
      %p142 = scmp.ne.s32.totalorder %s131, %s132
      %p143 = scmp.eq.s32.totalorder %s18, 0
      %p144 = por %p142, %p143
      %p145 = scmp.ne.s32.totalorder %s131, %s132
      %p146 = scmp.eq.s32.totalorder %s19, 1
      %p147 = por %p145, %p146
      %p149 = scmp.ne.s32.totalorder %s132, %s148
      %p150 = scmp.eq.s32.totalorder %s19, 0
      %p151 = por %p149, %p150
      %s152 = ssub.s32 %s20, %s32
      %p153 = scmp.eq.s32.totalorder %s152, 0
      %s155 = sadd.s32 %s154, 1
      %s156 = scalar_select %p153, %s154, %s155
      %p159 = pneg %p153
      %p160 = scmp.eq.s32.totalorder %s13, 1
      %p161 = por %p159, %p160
      %p162 = scmp.ne.s32.totalorder %s154, %s157
      %p163 = scmp.eq.s32.totalorder %s13, 0
      %p164 = por %p162, %p163
      %p165 = scmp.ne.s32.totalorder %s154, %s157
      %p166 = scmp.eq.s32.totalorder %s18, 1
      %p167 = por %p165, %p166
      %p168 = scmp.ne.s32.totalorder %s157, %s158
      %p169 = scmp.eq.s32.totalorder %s18, 0
      %p170 = por %p168, %p169
      %p171 = scmp.ne.s32.totalorder %s157, %s158
      %p172 = scmp.eq.s32.totalorder %s19, 1
      %p173 = por %p171, %p172
      %p175 = scmp.ne.s32.totalorder %s158, %s174
      %p176 = scmp.eq.s32.totalorder %s19, 0
      %p177 = por %p175, %p176
      %p178 = scmp.le.s32.totalorder 1, %s13
      %p179 = scmp.lt.s32.totalorder %s13, 3
      %p180 = pnand %p178, %p179
      %p181 = pneg %p180
      // Predicated region
      $region9: #{tpu_custom_call.1} parent=5 // pred_check
        _
      $region10: #{tpu_custom_call.1} parent=5 // pred_check_branch
        %183 = sbr.rel (%p180) target = $region12
      $region11: #{tpu_custom_call.1} parent=5 // pred_region
        %s184 = ssub.s32 %s13, 1
        // Predicated region
        $region13: #{tpu_custom_call.1} parent=11 // pred_check
          %p185 = pneg %p74
        $region14: #{tpu_custom_call.1} parent=11 // pred_check_branch
          %187 = sbr.rel (%p185) target = $region16
        $region15: #{tpu_custom_call.1} parent=11 // pred_region
          %s189 = ssub.s32 512, 512
          %190 = vsyncadd [#allocation3], %s189
          %s191 = sshll.u32 [#allocation2], 4
          %s192 = int_to_ptr.vmem [resolvable:$true] %s191
          %197 = dma.hbm_to_vmem [thread:$0]  %s1, 512, %s192, [#allocation3], 64, 64, 4
        $region16: #{tpu_custom_call.1} parent=11 // pred_fallthru
          _
        // Predicated region
        $region17: #{tpu_custom_call.1} parent=11 // pred_check
          %p198 = pneg %p95
        $region18: #{tpu_custom_call.1} parent=11 // pred_check_branch
          %200 = sbr.rel (%p198) target = $region20
        $region19: #{tpu_custom_call.1} parent=11 // pred_region
          %s202 = ssub.s32 512, 512
          %203 = vsyncadd [#allocation5], %s202
          %s204 = sshll.u32 [#allocation4], 4
          %s205 = int_to_ptr.vmem [resolvable:$true] %s204
          %210 = dma.hbm_to_vmem [thread:$0]  %s2, 512, %s205, [#allocation5], 64, 64, 4
        $region20: #{tpu_custom_call.1} parent=11 // pred_fallthru
          _
        // Predicated region
        $region21: #{tpu_custom_call.1} parent=11 // pred_check
          %p211 = pneg %p116
        $region22: #{tpu_custom_call.1} parent=11 // pred_check_branch
          %213 = sbr.rel (%p211) target = $region24
        $region23: #{tpu_custom_call.1} parent=11 // pred_region
          _
        $region24: #{tpu_custom_call.1} parent=11 // pred_fallthru
          _
      $region12: #{tpu_custom_call.1} parent=5 // pred_fallthru
        _
      %p214 = scmp.lt.s32.totalorder %s13, 2
      // Predicated region
      $region25: #{tpu_custom_call.1} parent=5 // pred_check
        %p215 = pneg %p214
      $region26: #{tpu_custom_call.1} parent=5 // pred_check_branch
        %217 = sbr.rel (%p215) target = $region28
      $region27: #{tpu_custom_call.1} parent=5 // pred_region
        // Predicated region
        $region29: #{tpu_custom_call.1} parent=27 // pred_check
          %p218 = pneg %p47
        $region30: #{tpu_custom_call.1} parent=27 // pred_check_branch
          %220 = sbr.rel (%p218) target = $region32
        $region31: #{tpu_custom_call.1} parent=27 // pred_region
          %s221 = smul.u32 2, %s21
          %p222 = scmp.lt.s32.totalorder %s20, 1
          %s223 = scalar_select %p222, %s20, 1
          %p224 = scmp.lt.s32.totalorder %s221, 1
          %s225 = scalar_select %p224, %s221, 1
          %s226 = smul.addr %s223, 2
          %s227 = sadd.s32 %s225, %s226
          %s228 = smul.addr %s227, 8
          %s229 = scalar_lea.vmem %s0, %s228
          %s230 = smul.u32 2, %s21
        $region32: #{tpu_custom_call.1} parent=27 // pred_fallthru
          _
        // Predicated region
        $region33: #{tpu_custom_call.1} parent=27 // pred_check
          %p231 = pneg %p138
        $region34: #{tpu_custom_call.1} parent=27 // pred_check_branch
          %233 = sbr.rel (%p231) target = $region36
        $region35: #{tpu_custom_call.1} parent=27 // pred_region
          %s234 = smul.u32 2, %s21
          %p235 = scmp.lt.s32.totalorder %s20, 1
          %s236 = scalar_select %p235, %s20, 1
          %p237 = scmp.lt.s32.totalorder %s234, 1
          %s238 = scalar_select %p237, %s234, 1
          %s239 = smul.addr %s236, 2
          %s240 = sadd.s32 %s238, %s239
          %s241 = smul.addr %s240, 8
          %s242 = scalar_lea.vmem %s4, %s241
          %s243 = smul.u32 2, %s21
        $region36: #{tpu_custom_call.1} parent=27 // pred_fallthru
          _
      $region28: #{tpu_custom_call.1} parent=5 // pred_fallthru
        _
      %p244 = scmp.le.s32.totalorder 1, %s13
      %p245 = scmp.lt.s32.totalorder %s13, 3
      %p246 = pnand %p244, %p245
      %p247 = pneg %p246
      // Predicated region
      $region37: #{tpu_custom_call.1} parent=5 // pred_check
        _
      $region38: #{tpu_custom_call.1} parent=5 // pred_check_branch
        %249 = sbr.rel (%p246) target = $region40
      $region39: #{tpu_custom_call.1} parent=5 // pred_region
        %s250 = ssub.s32 %s13, 1
        // Predicated region
        $region41: #{tpu_custom_call.1} parent=39 // pred_check
          %p251 = pneg %p74
        $region42: #{tpu_custom_call.1} parent=39 // pred_check_branch
          %253 = sbr.rel (%p251) target = $region44
        $region43: #{tpu_custom_call.1} parent=39 // pred_region
          %254 = dma.done [#allocation3], 512
        $region44: #{tpu_custom_call.1} parent=39 // pred_fallthru
          _
        // Predicated region
        $region45: #{tpu_custom_call.1} parent=39 // pred_check
          %p255 = pneg %p95
        $region46: #{tpu_custom_call.1} parent=39 // pred_check_branch
          %257 = sbr.rel (%p255) target = $region48
        $region47: #{tpu_custom_call.1} parent=39 // pred_region
          %258 = dma.done [#allocation5], 512
        $region48: #{tpu_custom_call.1} parent=39 // pred_fallthru
          _
        %s259 = smul.u32 2, %s23
        %p260 = scmp.lt.s32.totalorder %s22, 1
        %s261 = scalar_select %p260, %s22, 1
        %p262 = scmp.lt.s32.totalorder %s259, 1
        %s263 = scalar_select %p262, %s259, 1
        %s264 = smul.addr %s261, 2
        %s265 = sadd.s32 %s263, %s264
        %s266 = smul.addr %s265, 8
        %s267 = scalar_lea.vmem %s0, %s266
        %p268 = pneg %p53
        %p269 = pneg %p50
        %p270 = pneg %p74
        %p271 = pneg %p71
        %p272 = pneg %p95
        %p273 = pneg %p92
        %p274 = pneg %p116
        %p275 = pneg %p113
        %s276 = smul.u32 2, %s23
        %p277 = scmp.lt.s32.totalorder %s22, 1
        %s278 = scalar_select %p277, %s22, 1
        %p279 = scmp.lt.s32.totalorder %s276, 1
        %s280 = scalar_select %p279, %s276, 1
        %s281 = smul.addr %s278, 2
        %s282 = sadd.s32 %s280, %s281
        %s283 = smul.addr %s282, 8
        %s284 = scalar_lea.vmem %s4, %s283
        %p285 = pneg %p144
        %p286 = pneg %p141
        %p287 = pneg %p170
        %p288 = pneg %p167
        %p289 = scmp.lt.s32.totalorder %s22, 1
        %s290 = scalar_select %p289, %s22, 1
        %s291 = smul.addr %s290, 24
        %s292 = smul.addr %s291, 8
        %s293 = scalar_lea.vmem %s5, %s292
        %s294 = smul.u32 2, %s23
        %p295 = scmp.lt.s32.totalorder %s22, 1
        %s296 = scalar_select %p295, %s22, 1
        %p297 = scmp.lt.s32.totalorder %s294, 1
        %s298 = scalar_select %p297, %s294, 1
        %s299 = smul.addr %s296, 2
        %s300 = sadd.s32 %s298, %s299
        %s301 = smul.addr %s300, 8
        %s302 = scalar_lea.vmem %s0, %s301
        %s303 = smul.u32 2, %s23
        %s304 = smul.u32 2, %s23
        %p305 = scmp.lt.s32.totalorder %s22, 1
        %s306 = scalar_select %p305, %s22, 1
        %p307 = scmp.lt.s32.totalorder %s304, 1
        %s308 = scalar_select %p307, %s304, 1
        %s309 = smul.addr %s306, 2
        %s310 = sadd.s32 %s308, %s309
        %s311 = smul.addr %s310, 8
        %s312 = scalar_lea.vmem %s4, %s311
        %s313 = smul.u32 2, %s23
        %p314 = scmp.lt.s32.totalorder %s22, 1
        %s315 = scalar_select %p314, %s22, 1
        %s316 = smul.addr %s315, 24
        %s317 = smul.addr %s316, 8
        %s318 = scalar_lea.vmem %s5, %s317
        %v320 = vld [vmem:[%s302] sm:$0xff]
        %v321 = vld [vmem:[%s302 + $0x8] sm:$0xff]
        %v322 = vpack.c.bf16 %v321, %v320
        %v323 = vld [vmem:[#allocation2] sm:$0xf]
        %v324 = vld [vmem:[#allocation2 + $0x4] sm:$0xf]
        %v325 = vld [vmem:[#allocation2 + $0x8] sm:$0xf]
        %v326 = vld [vmem:[#allocation2 + $0xc] sm:$0xf]
        %v327 = vld [vmem:[#allocation2 + $0x10] sm:$0xf]
        %v328 = vld [vmem:[#allocation2 + $0x14] sm:$0xf]
        %v329 = vld [vmem:[#allocation2 + $0x18] sm:$0xf]
        %v330 = vld [vmem:[#allocation2 + $0x1c] sm:$0xf]
        %v339 = vunpack.c.l.b16 %v323
        %v340 = vunpack.c.l.b16 %v324
        %v341 = vunpack.c.l.b16 %v325
        %v342 = vunpack.c.l.b16 %v326
        %v343 = vunpack.c.l.b16 %v327
        %v344 = vunpack.c.l.b16 %v328
        %v345 = vunpack.c.l.b16 %v329
        %v346 = vunpack.c.l.b16 %v330
        %v347 = vpack.c.b16 %v340, %v339
        %v348 = vpack.c.b16 %v342, %v341
        %v349 = vpack.c.b16 %v344, %v343
        %v350 = vpack.c.b16 %v346, %v345
        %vm351 = vcmask 523264
        %v353 = vsel %vm351, %v322, 0
        %v356 = vsel %vm351, %v347, 0
        %v359 = vsel %vm351, %v348, 0
        %v362 = vsel %vm351, %v349, 0
        %v365 = vsel %vm351, %v350, 0
        %367 = vmatprep.subr.bf16.mxu0 0
        %368 = vmatpush1.bf16.xpose.msra.mxu0 %v356
        %369 = vmatprep.subr.bf16.mxu0 0
        %370 = vmatpush1.bf16.xpose.msra.mxu0 %v359
        %371 = vmatprep.subr.bf16.mxu0 0
        %372 = vmatpush1.bf16.xpose.msra.mxu0 %v362
        %373 = vmatprep.subr.bf16.mxu0 0
        %374 = vmatpush1.bf16.xpose.msra.mxu0 %v365
        %375 = vmatprep.subr.bf16.mxu0 0
        %376 = vmatpush1.bf16.xpose.msra.mxu0 0
        %377 = vmatprep.subr.bf16.mxu0 0
        %378 = vmatpush1.bf16.xpose.msra.mxu0 0
        %379 = vmatprep.subr.bf16.mxu0 0
        %380 = vmatpush1.bf16.xpose.msra.mxu0 0
        %381 = vmatprep.subr.bf16.mxu0 0
        %382 = vmatpush1.bf16.xpose.msra.mxu0 0
        %383 = vmatprep.subr.bf16.mxu0 0
        %384 = vmatpush1.bf16.xpose.msra.mxu0 0
        %385 = vmatprep.subr.bf16.mxu0 0
        %386 = vmatpush1.bf16.xpose.msra.mxu0 0
        %387 = vmatprep.subr.bf16.mxu0 0
        %388 = vmatpush1.bf16.xpose.msra.mxu0 0
        %389 = vmatprep.subr.bf16.mxu0 0
        %390 = vmatpush1.bf16.xpose.msra.mxu0 0
        %391 = vmatprep.subr.bf16.mxu0 0
        %392 = vmatpush1.bf16.xpose.msra.mxu0 0
        %393 = vmatprep.subr.bf16.mxu0 0
        %394 = vmatpush1.bf16.xpose.msra.mxu0 0
        %395 = vmatprep.subr.bf16.mxu0 0
        %396 = vmatpush1.bf16.xpose.msra.mxu0 0
        %397 = vmatprep.subr.bf16.mxu0 0
        %398 = vmatpush1.bf16.xpose.msra.mxu0 0
        %399 = vmatprep.mubr.bf16.mxu0 0
        %400 = vmatmul.mubr.bf16.gmra.mrb[0].mxu0 %v353
        %v401 = vpop.f32.mrb[0].mxu0
        %v402 = vadd.f32 0.0, %v401
        %v403 = vpop.f32.mrb[0].mxu0
        %v404 = vpop.f32.mrb[0].mxu0
        %v405 = vadd.f32 0.0, %v404
        %v406 = vpop.f32.mrb[0].mxu0
        %407 = vdwg.mxu0
        %v408 = vmul.f32 %v402, 1.442695
        %v409 = vpow.pop %v408
        %v410 = vmul.f32 %v405, 1.442695
        %v411 = vpow.pop %v410
        %v412 = vld [vmem:[#allocation4] sm:$0xf]
        %v413 = vld [vmem:[#allocation4 + $0x4] sm:$0xf]
        %v414 = vld [vmem:[#allocation4 + $0x8] sm:$0xf]
        %v415 = vld [vmem:[#allocation4 + $0xc] sm:$0xf]
        %v416 = vld [vmem:[#allocation4 + $0x10] sm:$0xf]
        %v417 = vld [vmem:[#allocation4 + $0x14] sm:$0xf]
        %v418 = vld [vmem:[#allocation4 + $0x18] sm:$0xf]
        %v419 = vld [vmem:[#allocation4 + $0x1c] sm:$0xf]
        %v428 = vunpack.c.l.b16 %v412
        %v429 = vunpack.c.l.b16 %v413
        %v430 = vunpack.c.l.b16 %v414
        %v431 = vunpack.c.l.b16 %v415
        %v432 = vunpack.c.l.b16 %v416
        %v433 = vunpack.c.l.b16 %v417
        %v434 = vunpack.c.l.b16 %v418
        %v435 = vunpack.c.l.b16 %v419
        %v436 = vpack.c.b16 %v429, %v428
        %v437 = vpack.c.b16 %v431, %v430
        %v438 = vpack.c.b16 %v433, %v432
        %v439 = vpack.c.b16 %v435, %v434
        %v441 = vsel %vm351, %v436, 0
        %v444 = vsel %vm351, %v437, 0
        %v447 = vsel %vm351, %v438, 0
        %v450 = vsel %vm351, %v439, 0
        %452 = vmatprep.subr.bf16.mxu0 0
        %453 = vmatpush1.bf16.xpose.msra.mxu0 %v441
        %454 = vmatprep.subr.bf16.mxu0 0
        %455 = vmatpush1.bf16.xpose.msra.mxu0 %v444
        %456 = vmatprep.subr.bf16.mxu0 0
        %457 = vmatpush1.bf16.xpose.msra.mxu0 %v447
        %458 = vmatprep.subr.bf16.mxu0 0
        %459 = vmatpush1.bf16.xpose.msra.mxu0 %v450
        %460 = vmatprep.subr.bf16.mxu0 0
        %461 = vmatpush1.bf16.xpose.msra.mxu0 0
        %462 = vmatprep.subr.bf16.mxu0 0
        %463 = vmatpush1.bf16.xpose.msra.mxu0 0
        %464 = vmatprep.subr.bf16.mxu0 0
        %465 = vmatpush1.bf16.xpose.msra.mxu0 0
        %466 = vmatprep.subr.bf16.mxu0 0
        %467 = vmatpush1.bf16.xpose.msra.mxu0 0
        %468 = vmatprep.subr.bf16.mxu0 0
        %469 = vmatpush1.bf16.xpose.msra.mxu0 0
        %470 = vmatprep.subr.bf16.mxu0 0
        %471 = vmatpush1.bf16.xpose.msra.mxu0 0
        %472 = vmatprep.subr.bf16.mxu0 0
        %473 = vmatpush1.bf16.xpose.msra.mxu0 0
        %474 = vmatprep.subr.bf16.mxu0 0
        %475 = vmatpush1.bf16.xpose.msra.mxu0 0
        %476 = vmatprep.subr.bf16.mxu0 0
        %477 = vmatpush1.bf16.xpose.msra.mxu0 0
        %478 = vmatprep.subr.bf16.mxu0 0
        %479 = vmatpush1.bf16.xpose.msra.mxu0 0
        %480 = vmatprep.subr.bf16.mxu0 0
        %481 = vmatpush1.bf16.xpose.msra.mxu0 0
        %482 = vmatprep.subr.bf16.mxu0 0
        %483 = vmatpush1.bf16.xpose.msra.mxu0 0
        %484 = vmatprep.mubr.bf16.mxu0 0
        %485 = vmatmul.mubr.bf16.gmra.mrb[0].mxu0 %v353
        %v486 = vpop.f32.mrb[0].mxu0
        %v487 = vadd.f32 0.0, %v486
        %v488 = vpop.f32.mrb[0].mxu0
        %v489 = vpop.f32.mrb[0].mxu0
        %v490 = vadd.f32 0.0, %v489
        %v491 = vpop.f32.mrb[0].mxu0
        %492 = vdwg.mxu0
        %v493 = vld [vmem:[%s312] sm:$0xff]
        %v494 = vld [vmem:[%s312 + $0x8] sm:$0xff]
        %v495 = vld [vmem:[%s3] sm:$0x1]
        %497 = vset.pattern.permute.xlu0 0
        %498 = vperm.xlu0 %497, %v493
        %v499 = vpop.permute.xlu0 %498
        %502 = vset.pattern.permute.xlu0 0
        %503 = vperm.xlu0 %502, %v494
        %v504 = vpop.permute.xlu0 %503
        %v507 = vlaneseq
        %v508 = vshrl.u32 %v507, 7
        %v509 = vsub.s32 0, %v508
        %v510 = vrot.slane %v495, %v509
        %v512 = vmul.f32 %v499, %v510
        %v513 = vmul.f32 %v504, %v510
        %v514 = vand.u32 2147483647, %v512
        %vm515 = vcmp.le.f32.partialorder %v514, 0.7853982
        %vm516 = vcmp.lt.s32.totalorder %v512, 0
        %v517 = vand.u32 %v512, 2139095040
        %v518 = vshrl.u32 %v517, 23
        %v519 = vsub.s32 %v518, 127
        %v520 = vand.u32 2147483647, %v512
        %v521 = vand.u32 %v520, 8388607
        %v522 = vor.u32 %v521, 8388608
        %v523 = vsub.s32 0, %v522
        %v524 = vadd.s32 %v519, 1
        %vm525 = vcmp.gt.s32.totalorder %v524, 0
        %v526 = vsel %vm525, %v524, 0
        %v527 = vshrl.u32 %v526, 5
        %v528 = vand.u32 %v526, 31
        %v529 = vsub.s32 32, %v528
        %v530 = vshrl.u32 683565275, %v529
        %v531 = vshll.u32 683565275, %v528
        %v532 = vshrl.u32 2475754826, %v529
        %v533 = vor.u32 %v531, %v532
        %v534 = vshll.u32 2475754826, %v528
        %v535 = vshrl.u32 2131351028, %v529
        %v536 = vor.u32 %v534, %v535
        %v537 = vshll.u32 2131351028, %v528
        %v538 = vshrl.u32 2102212464, %v529
        %v539 = vor.u32 %v537, %v538
        %v540 = vshll.u32 2102212464, %v528
        %v541 = vshrl.u32 920167782, %v529
        %v542 = vor.u32 %v540, %v541
        %v543 = vshll.u32 920167782, %v528
        %v544 = vshrl.u32 1326507024, %v529
        %v545 = vor.u32 %v543, %v544
        %vm546 = vcmp.lt.s32.totalorder %v527, 1
        %vm547 = vcmp.lt.s32.totalorder %v527, 2
        %vm548 = vcmp.lt.s32.totalorder %v527, 3
        %vm549 = vcmp.lt.s32.totalorder %v527, 4
        %v550 = vsel %vm546, %v530, %v533
        %v551 = vsel %vm549, %v539, 2102212464
        %v552 = vsel %vm548, %v536, %v551
        %v553 = vsel %vm547, %v550, %v552
        %v554 = vsel %vm546, %v533, %v536
        %v555 = vsel %vm549, %v542, 920167782
        %v556 = vsel %vm548, %v539, %v555
        %v557 = vsel %vm547, %v554, %v556
        %v558 = vsel %vm546, %v536, %v539
        %v559 = vsel %vm549, %v545, 1326507024
        %v560 = vsel %vm548, %v542, %v559
        %v561 = vsel %vm547, %v558, %v560
        %v562 = vshll.u32 %v522, 8
        %v563 = vmul.u32.u64.compose %v562, %v561
        %v564 = vextract.low.u32 %v563
        %v565 = vextract.high.u32 %v563
        %v566 = vmul.u32.u64.compose %v562, %v557
        %v567 = vextract.low.u32 %v566
        %v568 = vextract.high.u32 %v566
        %v569 = vmul.u32 %v562, %v553
        %v570 = vadd.s32 %v565, %v567
        %vm571 = vc.u32 %v565, %v567
        %v572 = vadd.s32 %v568, 1
        %v573 = vsel %vm571, %v572, %v568
        %v574 = vadd.s32 %v569, %v573
        %v575 = vadd.s32 %v574, 536870912
        %v576 = vshrl.u32 %v575, 30
        %v577 = vshll.u32 %v576, 30
        %v578 = vsub.s32 %v574, %v577
        %vm579 = vcmp.lt.s32.totalorder %v578, 0
        %v580 = vsub.s32 0, %v578
        %v581 = vsel %vm579, %v580, %v578
        %v582 = vclz %v581
        %v583 = vsub.s32 %v582, 2
        %vm584 = vcmp.gt.s32.totalorder 0, %v583
        %v585 = vsel %vm584, 0, %v583
        %v586 = vsub.s32 32, %v585
        %v587 = vshll.u32 %v578, %v585
        %v588 = vshrl.u32 %v570, %v586
        %v589 = vor.u32 %v587, %v588
        %v590 = vsub.s32 4294967266, %v585
        %v591 = vadd.s32 %v590, 127
        %v592 = vshll.u32 %v591, 23
        %v593 = vor.u32 4788187, %v592
        %v594 = vand.u32 2147483647, %v593
        %v596 = vcvt.s32.f32 %v589
        %v597 = vmul.f32 %v596, %v594
        %v598 = vxor.u32 %v597, 2147483648
        %v599 = vsel %vm516, %v598, %v597
        %v600 = vsub.s32 4, %v576
        %v601 = vsel %vm516, %v600, %v576
        %v602 = vsel %vm515, %v512, %v599
        %v603 = vsel %vm515, 0, %v601
        %v604 = vcosq.f32.pop %v602
        %v605 = vsinq.f32.pop %v602
        %vm606 = vweird.f32 %v512
        %v607 = vand.u32 %v603, 3
        %vm608 = vcmp.lt.s32.totalorder %v607, 2
        %vm609 = vcmp.eq.s32.totalorder %v607, 0
        %v610 = vxor.u32 %v605, 2147483648
        %v611 = vsel %vm609, %v604, %v610
        %vm612 = vcmp.eq.s32.totalorder %v607, 2
        %v613 = vxor.u32 %v604, 2147483648
        %v614 = vsel %vm612, %v613, %v605
        %v615 = vsel %vm608, %v611, %v614
        %v616 = vsel %vm606, nan, %v615
        %v617 = vand.u32 2147483647, %v513
        %vm618 = vcmp.le.f32.partialorder %v617, 0.7853982
        %vm619 = vcmp.lt.s32.totalorder %v513, 0
        %v620 = vand.u32 %v513, 2139095040
        %v621 = vshrl.u32 %v620, 23
        %v622 = vsub.s32 %v621, 127
        %v623 = vand.u32 2147483647, %v513
        %v624 = vand.u32 %v623, 8388607
        %v625 = vor.u32 %v624, 8388608
        %v626 = vsub.s32 0, %v625
        %v627 = vadd.s32 %v622, 1
        %vm628 = vcmp.gt.s32.totalorder %v627, 0
        %v629 = vsel %vm628, %v627, 0
        %v630 = vshrl.u32 %v629, 5
        %v631 = vand.u32 %v629, 31
        %v632 = vsub.s32 32, %v631
        %v633 = vshrl.u32 683565275, %v632
        %v634 = vshll.u32 683565275, %v631
        %v635 = vshrl.u32 2475754826, %v632
        %v636 = vor.u32 %v634, %v635
        %v637 = vshll.u32 2475754826, %v631
        %v638 = vshrl.u32 2131351028, %v632
        %v639 = vor.u32 %v637, %v638
        %v640 = vshll.u32 2131351028, %v631
        %v641 = vshrl.u32 2102212464, %v632
        %v642 = vor.u32 %v640, %v641
        %v643 = vshll.u32 2102212464, %v631
        %v644 = vshrl.u32 920167782, %v632
        %v645 = vor.u32 %v643, %v644
        %v646 = vshll.u32 920167782, %v631
        %v647 = vshrl.u32 1326507024, %v632
        %v648 = vor.u32 %v646, %v647
        %vm649 = vcmp.lt.s32.totalorder %v630, 1
        %vm650 = vcmp.lt.s32.totalorder %v630, 2
        %vm651 = vcmp.lt.s32.totalorder %v630, 3
        %vm652 = vcmp.lt.s32.totalorder %v630, 4
        %v653 = vsel %vm649, %v633, %v636
        %v654 = vsel %vm652, %v642, 2102212464
        %v655 = vsel %vm651, %v639, %v654
        %v656 = vsel %vm650, %v653, %v655
        %v657 = vsel %vm649, %v636, %v639
        %v658 = vsel %vm652, %v645, 920167782
        %v659 = vsel %vm651, %v642, %v658
        %v660 = vsel %vm650, %v657, %v659
        %v661 = vsel %vm649, %v639, %v642
        %v662 = vsel %vm652, %v648, 1326507024
        %v663 = vsel %vm651, %v645, %v662
        %v664 = vsel %vm650, %v661, %v663
        %v665 = vshll.u32 %v625, 8
        %v666 = vmul.u32.u64.compose %v665, %v664
        %v667 = vextract.low.u32 %v666
        %v668 = vextract.high.u32 %v666
        %v669 = vmul.u32.u64.compose %v665, %v660
        %v670 = vextract.low.u32 %v669
        %v671 = vextract.high.u32 %v669
        %v672 = vmul.u32 %v665, %v656
        %v673 = vadd.s32 %v668, %v670
        %vm674 = vc.u32 %v668, %v670
        %v675 = vadd.s32 %v671, 1
        %v676 = vsel %vm674, %v675, %v671
        %v677 = vadd.s32 %v672, %v676
        %v678 = vadd.s32 %v677, 536870912
        %v679 = vshrl.u32 %v678, 30
        %v680 = vshll.u32 %v679, 30
        %v681 = vsub.s32 %v677, %v680
        %vm682 = vcmp.lt.s32.totalorder %v681, 0
        %v683 = vsub.s32 0, %v681
        %v684 = vsel %vm682, %v683, %v681
        %v685 = vclz %v684
        %v686 = vsub.s32 %v685, 2
        %vm687 = vcmp.gt.s32.totalorder 0, %v686
        %v688 = vsel %vm687, 0, %v686
        %v689 = vsub.s32 32, %v688
        %v690 = vshll.u32 %v681, %v688
        %v691 = vshrl.u32 %v673, %v689
        %v692 = vor.u32 %v690, %v691
        %v693 = vsub.s32 4294967266, %v688
        %v694 = vadd.s32 %v693, 127
        %v695 = vshll.u32 %v694, 23
        %v696 = vor.u32 4788187, %v695
        %v697 = vand.u32 2147483647, %v696
        %v699 = vcvt.s32.f32 %v692
        %v700 = vmul.f32 %v699, %v697
        %v701 = vxor.u32 %v700, 2147483648
        %v702 = vsel %vm619, %v701, %v700
        %v703 = vsub.s32 4, %v679
        %v704 = vsel %vm619, %v703, %v679
        %v705 = vsel %vm618, %v513, %v702
        %v706 = vsel %vm618, 0, %v704
        %v707 = vcosq.f32.pop %v705
        %v708 = vsinq.f32.pop %v705
        %vm709 = vweird.f32 %v513
        %v710 = vand.u32 %v706, 3
        %vm711 = vcmp.lt.s32.totalorder %v710, 2
        %vm712 = vcmp.eq.s32.totalorder %v710, 0
        %v713 = vxor.u32 %v708, 2147483648
        %v714 = vsel %vm712, %v707, %v713
        %vm715 = vcmp.eq.s32.totalorder %v710, 2
        %v716 = vxor.u32 %v707, 2147483648
        %v717 = vsel %vm715, %v716, %v708
        %v718 = vsel %vm711, %v714, %v717
        %v719 = vsel %vm709, nan, %v718
        %v720 = vmul.f32 %v409, %v616
        %v721 = vmul.f32 %v411, %v719
        %v722 = vand.u32 2147483647, %v512
        %vm723 = vcmp.le.f32.partialorder %v722, 0.7853982
        %vm724 = vcmp.lt.s32.totalorder %v512, 0
        %v725 = vand.u32 %v512, 2139095040
        %v726 = vshrl.u32 %v725, 23
        %v727 = vsub.s32 %v726, 127
        %v728 = vand.u32 2147483647, %v512
        %v729 = vand.u32 %v728, 8388607
        %v730 = vor.u32 %v729, 8388608
        %v731 = vsub.s32 0, %v730
        %v732 = vadd.s32 %v727, 1
        %vm733 = vcmp.gt.s32.totalorder %v732, 0
        %v734 = vsel %vm733, %v732, 0
        %v735 = vshrl.u32 %v734, 5
        %v736 = vand.u32 %v734, 31
        %v737 = vsub.s32 32, %v736
        %v738 = vshrl.u32 683565275, %v737
        %v739 = vshll.u32 683565275, %v736
        %v740 = vshrl.u32 2475754826, %v737
        %v741 = vor.u32 %v739, %v740
        %v742 = vshll.u32 2475754826, %v736
        %v743 = vshrl.u32 2131351028, %v737
        %v744 = vor.u32 %v742, %v743
        %v745 = vshll.u32 2131351028, %v736
        %v746 = vshrl.u32 2102212464, %v737
        %v747 = vor.u32 %v745, %v746
        %v748 = vshll.u32 2102212464, %v736
        %v749 = vshrl.u32 920167782, %v737
        %v750 = vor.u32 %v748, %v749
        %v751 = vshll.u32 920167782, %v736
        %v752 = vshrl.u32 1326507024, %v737
        %v753 = vor.u32 %v751, %v752
        %vm754 = vcmp.lt.s32.totalorder %v735, 1
        %vm755 = vcmp.lt.s32.totalorder %v735, 2
        %vm756 = vcmp.lt.s32.totalorder %v735, 3
        %vm757 = vcmp.lt.s32.totalorder %v735, 4
        %v758 = vsel %vm754, %v738, %v741
        %v759 = vsel %vm757, %v747, 2102212464
        %v760 = vsel %vm756, %v744, %v759
        %v761 = vsel %vm755, %v758, %v760
        %v762 = vsel %vm754, %v741, %v744
        %v763 = vsel %vm757, %v750, 920167782
        %v764 = vsel %vm756, %v747, %v763
        %v765 = vsel %vm755, %v762, %v764
        %v766 = vsel %vm754, %v744, %v747
        %v767 = vsel %vm757, %v753, 1326507024
        %v768 = vsel %vm756, %v750, %v767
        %v769 = vsel %vm755, %v766, %v768
        %v770 = vshll.u32 %v730, 8
        %v771 = vmul.u32.u64.compose %v770, %v769
        %v772 = vextract.low.u32 %v771
        %v773 = vextract.high.u32 %v771
        %v774 = vmul.u32.u64.compose %v770, %v765
        %v775 = vextract.low.u32 %v774
        %v776 = vextract.high.u32 %v774
        %v777 = vmul.u32 %v770, %v761
        %v778 = vadd.s32 %v773, %v775
        %vm779 = vc.u32 %v773, %v775
        %v780 = vadd.s32 %v776, 1
        %v781 = vsel %vm779, %v780, %v776
        %v782 = vadd.s32 %v777, %v781
        %v783 = vadd.s32 %v782, 536870912
        %v784 = vshrl.u32 %v783, 30
        %v785 = vshll.u32 %v784, 30
        %v786 = vsub.s32 %v782, %v785
        %vm787 = vcmp.lt.s32.totalorder %v786, 0
        %v788 = vsub.s32 0, %v786
        %v789 = vsel %vm787, %v788, %v786
        %v790 = vclz %v789
        %v791 = vsub.s32 %v790, 2
        %vm792 = vcmp.gt.s32.totalorder 0, %v791
        %v793 = vsel %vm792, 0, %v791
        %v794 = vsub.s32 32, %v793
        %v795 = vshll.u32 %v786, %v793
        %v796 = vshrl.u32 %v778, %v794
        %v797 = vor.u32 %v795, %v796
        %v798 = vsub.s32 4294967266, %v793
        %v799 = vadd.s32 %v798, 127
        %v800 = vshll.u32 %v799, 23
        %v801 = vor.u32 4788187, %v800
        %v802 = vand.u32 2147483647, %v801
        %v804 = vcvt.s32.f32 %v797
        %v805 = vmul.f32 %v804, %v802
        %v806 = vxor.u32 %v805, 2147483648
        %v807 = vsel %vm724, %v806, %v805
        %v808 = vsub.s32 4, %v784
        %v809 = vsel %vm724, %v808, %v784
        %v810 = vsel %vm723, %v512, %v807
        %v811 = vsel %vm723, 0, %v809
        %v812 = vcosq.f32.pop %v810
        %v813 = vsinq.f32.pop %v810
        %vm814 = vweird.f32 %v512
        %v815 = vadd.s32 %v811, 3
        %v816 = vand.u32 %v815, 3
        %vm817 = vcmp.lt.s32.totalorder %v816, 2
        %vm818 = vcmp.eq.s32.totalorder %v816, 0
        %v819 = vxor.u32 %v813, 2147483648
        %v820 = vsel %vm818, %v812, %v819
        %vm821 = vcmp.eq.s32.totalorder %v816, 2
        %v822 = vxor.u32 %v812, 2147483648
        %v823 = vsel %vm821, %v822, %v813
        %v824 = vsel %vm817, %v820, %v823
        %v825 = vsel %vm814, nan, %v824
        %v826 = vand.u32 2147483647, %v513
        %vm827 = vcmp.le.f32.partialorder %v826, 0.7853982
        %vm828 = vcmp.lt.s32.totalorder %v513, 0
        %v829 = vand.u32 %v513, 2139095040
        %v830 = vshrl.u32 %v829, 23
        %v831 = vsub.s32 %v830, 127
        %v832 = vand.u32 2147483647, %v513
        %v833 = vand.u32 %v832, 8388607
        %v834 = vor.u32 %v833, 8388608
        %v835 = vsub.s32 0, %v834
        %v836 = vadd.s32 %v831, 1
        %vm837 = vcmp.gt.s32.totalorder %v836, 0
        %v838 = vsel %vm837, %v836, 0
        %v839 = vshrl.u32 %v838, 5
        %v840 = vand.u32 %v838, 31
        %v841 = vsub.s32 32, %v840
        %v842 = vshrl.u32 683565275, %v841
        %v843 = vshll.u32 683565275, %v840
        %v844 = vshrl.u32 2475754826, %v841
        %v845 = vor.u32 %v843, %v844
        %v846 = vshll.u32 2475754826, %v840
        %v847 = vshrl.u32 2131351028, %v841
        %v848 = vor.u32 %v846, %v847
        %v849 = vshll.u32 2131351028, %v840
        %v850 = vshrl.u32 2102212464, %v841
        %v851 = vor.u32 %v849, %v850
        %v852 = vshll.u32 2102212464, %v840
        %v853 = vshrl.u32 920167782, %v841
        %v854 = vor.u32 %v852, %v853
        %v855 = vshll.u32 920167782, %v840
        %v856 = vshrl.u32 1326507024, %v841
        %v857 = vor.u32 %v855, %v856
        %vm858 = vcmp.lt.s32.totalorder %v839, 1
        %vm859 = vcmp.lt.s32.totalorder %v839, 2
        %vm860 = vcmp.lt.s32.totalorder %v839, 3
        %vm861 = vcmp.lt.s32.totalorder %v839, 4
        %v862 = vsel %vm858, %v842, %v845
        %v863 = vsel %vm861, %v851, 2102212464
        %v864 = vsel %vm860, %v848, %v863
        %v865 = vsel %vm859, %v862, %v864
        %v866 = vsel %vm858, %v845, %v848
        %v867 = vsel %vm861, %v854, 920167782
        %v868 = vsel %vm860, %v851, %v867
        %v869 = vsel %vm859, %v866, %v868
        %v870 = vsel %vm858, %v848, %v851
        %v871 = vsel %vm861, %v857, 1326507024
        %v872 = vsel %vm860, %v854, %v871
        %v873 = vsel %vm859, %v870, %v872
        %v874 = vshll.u32 %v834, 8
        %v875 = vmul.u32.u64.compose %v874, %v873
        %v876 = vextract.low.u32 %v875
        %v877 = vextract.high.u32 %v875
        %v878 = vmul.u32.u64.compose %v874, %v869
        %v879 = vextract.low.u32 %v878
        %v880 = vextract.high.u32 %v878
        %v881 = vmul.u32 %v874, %v865
        %v882 = vadd.s32 %v877, %v879
        %vm883 = vc.u32 %v877, %v879
        %v884 = vadd.s32 %v880, 1
        %v885 = vsel %vm883, %v884, %v880
        %v886 = vadd.s32 %v881, %v885
        %v887 = vadd.s32 %v886, 536870912
        %v888 = vshrl.u32 %v887, 30
        %v889 = vshll.u32 %v888, 30
        %v890 = vsub.s32 %v886, %v889
        %vm891 = vcmp.lt.s32.totalorder %v890, 0
        %v892 = vsub.s32 0, %v890
        %v893 = vsel %vm891, %v892, %v890
        %v894 = vclz %v893
        %v895 = vsub.s32 %v894, 2
        %vm896 = vcmp.gt.s32.totalorder 0, %v895
        %v897 = vsel %vm896, 0, %v895
        %v898 = vsub.s32 32, %v897
        %v899 = vshll.u32 %v890, %v897
        %v900 = vshrl.u32 %v882, %v898
        %v901 = vor.u32 %v899, %v900
        %v902 = vsub.s32 4294967266, %v897
        %v903 = vadd.s32 %v902, 127
        %v904 = vshll.u32 %v903, 23
        %v905 = vor.u32 4788187, %v904
        %v906 = vand.u32 2147483647, %v905
        %v908 = vcvt.s32.f32 %v901
        %v909 = vmul.f32 %v908, %v906
        %v910 = vxor.u32 %v909, 2147483648
        %v911 = vsel %vm828, %v910, %v909
        %v912 = vsub.s32 4, %v888
        %v913 = vsel %vm828, %v912, %v888
        %v914 = vsel %vm827, %v513, %v911
        %v915 = vsel %vm827, 0, %v913
        %v916 = vcosq.f32.pop %v914
        %v917 = vsinq.f32.pop %v914
        %vm918 = vweird.f32 %v513
        %v919 = vadd.s32 %v915, 3
        %v920 = vand.u32 %v919, 3
        %vm921 = vcmp.lt.s32.totalorder %v920, 2
        %vm922 = vcmp.eq.s32.totalorder %v920, 0
        %v923 = vxor.u32 %v917, 2147483648
        %v924 = vsel %vm922, %v916, %v923
        %vm925 = vcmp.eq.s32.totalorder %v920, 2
        %v926 = vxor.u32 %v916, 2147483648
        %v927 = vsel %vm925, %v926, %v917
        %v928 = vsel %vm921, %v924, %v927
        %v929 = vsel %vm918, nan, %v928
        %v930 = vmul.f32 %v409, %v825
        %v931 = vmul.f32 %v411, %v929
        %934 = vrot.lane.b32.xlu0 %v930, 64
        %v935 = vpop.permute.xlu0 %934
        %936 = vrot.lane.b32.xlu0 %v931, 64
        %v937 = vpop.permute.xlu0 %936
        %v940 = vsel %vm351, %v720, %v935
        %v941 = vsel %vm351, %v721, %v937
        %v942 = vsel %vm351, %v487, 1.0
        %v943 = vsel %vm351, %v490, 1.0
        %v944 = vpack.c.bf16 %v941, %v940
        %v945 = vpack.c.bf16 %v411, %v409
        %v946 = vpack.c.bf16 %v943, %v942
        %947 = vxpose.xlu0.c.b16.start [1/8] %v944, 128
        %948 = vxpose.xlu0.c.b16.cont [2/8] 0, 128
        %949 = vxpose.xlu0.c.b16.cont [3/8] 0, 128
        %950 = vxpose.xlu0.c.b16.cont [4/8] 0, 128
        %951 = vxpose.xlu0.c.b16.cont [5/8] 0, 128
        %952 = vxpose.xlu0.c.b16.cont [6/8] 0, 128
        %953 = vxpose.xlu0.c.b16.cont [7/8] 0, 128
        %954 = vxpose.xlu0.c.b16.end [8/8] 0, 128
        %v955 = vpop.trf.xlu0
        %v956 = vpop.trf.xlu0
        %v957 = vpop.trf.xlu0
        %v958 = vpop.trf.xlu0
        %v959 = vpop.trf.xlu0
        %v960 = vpop.trf.xlu0
        %v961 = vpop.trf.xlu0
        %v962 = vpop.trf.xlu0
        %963 = vxpose.xlu0.c.b16.start [1/8] %v945, 128
        %964 = vxpose.xlu0.c.b16.cont [2/8] 0, 128
        %965 = vxpose.xlu0.c.b16.cont [3/8] 0, 128
        %966 = vxpose.xlu0.c.b16.cont [4/8] 0, 128
        %967 = vxpose.xlu0.c.b16.cont [5/8] 0, 128
        %968 = vxpose.xlu0.c.b16.cont [6/8] 0, 128
        %969 = vxpose.xlu0.c.b16.cont [7/8] 0, 128
        %970 = vxpose.xlu0.c.b16.end [8/8] 0, 128
        %v971 = vpop.trf.xlu0
        %v972 = vpop.trf.xlu0
        %v973 = vpop.trf.xlu0
        %v974 = vpop.trf.xlu0
        %v975 = vpop.trf.xlu0
        %v976 = vpop.trf.xlu0
        %v977 = vpop.trf.xlu0
        %v978 = vpop.trf.xlu0
        %vm979 = vcmask 130048
        %v981 = vsel %vm979, %v955, 0
        %v984 = vsel %vm979, %v956, 0
        %v987 = vsel %vm979, %v957, 0
        %v990 = vsel %vm979, %v958, 0
        %v993 = vsel %vm979, %v959, 0
        %v996 = vsel %vm979, %v960, 0
        %v999 = vsel %vm979, %v961, 0
        %v1002 = vsel %vm979, %v962, 0
        %v1005 = vsel %vm979, %v971, 0
        %v1008 = vsel %vm979, %v972, 0
        %v1011 = vsel %vm979, %v973, 0
        %v1014 = vsel %vm979, %v974, 0
        %1016 = vmatprep.subr.bf16.mxu0 0
        %1017 = vmatpush1.bf16.msra.mxu0 %v946
        %1018 = vmatprep.subr.bf16.mxu0 0
        %1019 = vmatpush1.bf16.msra.mxu0 0
        %1020 = vmatprep.subr.bf16.mxu0 0
        %1021 = vmatpush1.bf16.msra.mxu0 0
        %1022 = vmatprep.subr.bf16.mxu0 0
        %1023 = vmatpush1.bf16.msra.mxu0 0
        %1024 = vmatprep.subr.bf16.mxu0 0
        %1025 = vmatpush1.bf16.msra.mxu0 0
        %1026 = vmatprep.subr.bf16.mxu0 0
        %1027 = vmatpush1.bf16.msra.mxu0 0
        %1028 = vmatprep.subr.bf16.mxu0 0
        %1029 = vmatpush1.bf16.msra.mxu0 0
        %1030 = vmatprep.subr.bf16.mxu0 0
        %1031 = vmatpush1.bf16.msra.mxu0 0
        %1032 = vmatprep.subr.bf16.mxu0 0
        %1033 = vmatpush1.bf16.msra.mxu0 0
        %1034 = vmatprep.subr.bf16.mxu0 0
        %1035 = vmatpush1.bf16.msra.mxu0 0
        %1036 = vmatprep.subr.bf16.mxu0 0
        %1037 = vmatpush1.bf16.msra.mxu0 0
        %1038 = vmatprep.subr.bf16.mxu0 0
        %1039 = vmatpush1.bf16.msra.mxu0 0
        %1040 = vmatprep.subr.bf16.mxu0 0
        %1041 = vmatpush1.bf16.msra.mxu0 0
        %1042 = vmatprep.subr.bf16.mxu0 0
        %1043 = vmatpush1.bf16.msra.mxu0 0
        %1044 = vmatprep.subr.bf16.mxu0 0
        %1045 = vmatpush1.bf16.msra.mxu0 0
        %1046 = vmatprep.subr.bf16.mxu0 0
        %1047 = vmatpush1.bf16.msra.mxu0 0
        %1048 = vmatprep.mubr.bf16.mxu0 0
        %1049 = vmatmul.mubr.bf16.gmra.mrb[0].mxu0 %v981
        %v1050 = vpop.f32.mrb[0].mxu0
        %v1051 = vadd.f32 0.0, %v1050
        %v1052 = vpop.f32.mrb[0].mxu0
        %v1053 = vpop.f32.mrb[0].mxu0
        %v1054 = vadd.f32 0.0, %v1053
        %v1055 = vpop.f32.mrb[0].mxu0
        %1056 = vmatprep.mubr.bf16.mxu0 0
        %1057 = vmatmul.mubr.bf16.gmra.mrb[0].mxu0 %v984
        %v1058 = vpop.f32.mrb[0].mxu0
        %v1059 = vadd.f32 0.0, %v1058
        %v1060 = vpop.f32.mrb[0].mxu0
        %v1061 = vpop.f32.mrb[0].mxu0
        %v1062 = vadd.f32 0.0, %v1061
        %v1063 = vpop.f32.mrb[0].mxu0
        %1064 = vmatprep.mubr.bf16.mxu0 0
        %1065 = vmatmul.mubr.bf16.gmra.mrb[0].mxu0 %v987
        %v1066 = vpop.f32.mrb[0].mxu0
        %v1067 = vadd.f32 0.0, %v1066
        %v1068 = vpop.f32.mrb[0].mxu0
        %v1069 = vpop.f32.mrb[0].mxu0
        %v1070 = vadd.f32 0.0, %v1069
        %v1071 = vpop.f32.mrb[0].mxu0
        %1072 = vmatprep.mubr.bf16.mxu0 0
        %1073 = vmatmul.mubr.bf16.gmra.mrb[0].mxu0 %v990
        %v1074 = vpop.f32.mrb[0].mxu0
        %v1075 = vadd.f32 0.0, %v1074
        %v1076 = vpop.f32.mrb[0].mxu0
        %v1077 = vpop.f32.mrb[0].mxu0
        %v1078 = vadd.f32 0.0, %v1077
        %v1079 = vpop.f32.mrb[0].mxu0
        %1080 = vmatprep.mubr.bf16.mxu0 0
        %1081 = vmatmul.mubr.bf16.gmra.mrb[0].mxu0 %v993
        %v1082 = vpop.f32.mrb[0].mxu0
        %v1083 = vadd.f32 0.0, %v1082
        %v1084 = vpop.f32.mrb[0].mxu0
        %v1085 = vpop.f32.mrb[0].mxu0
        %v1086 = vadd.f32 0.0, %v1085
        %v1087 = vpop.f32.mrb[0].mxu0
        %1088 = vmatprep.mubr.bf16.mxu0 0
        %1089 = vmatmul.mubr.bf16.gmra.mrb[0].mxu0 %v996
        %v1090 = vpop.f32.mrb[0].mxu0
        %v1091 = vadd.f32 0.0, %v1090
        %v1092 = vpop.f32.mrb[0].mxu0
        %v1093 = vpop.f32.mrb[0].mxu0
        %v1094 = vadd.f32 0.0, %v1093
        %v1095 = vpop.f32.mrb[0].mxu0
        %1096 = vmatprep.mubr.bf16.mxu0 0
        %1097 = vmatmul.mubr.bf16.gmra.mrb[0].mxu0 %v999
        %v1098 = vpop.f32.mrb[0].mxu0
        %v1099 = vadd.f32 0.0, %v1098
        %v1100 = vpop.f32.mrb[0].mxu0
        %v1101 = vpop.f32.mrb[0].mxu0
        %v1102 = vadd.f32 0.0, %v1101
        %v1103 = vpop.f32.mrb[0].mxu0
        %1104 = vmatprep.mubr.bf16.mxu0 0
        %1105 = vmatmul.mubr.bf16.gmra.mrb[0].mxu0 %v1002
        %v1106 = vpop.f32.mrb[0].mxu0
        %v1107 = vadd.f32 0.0, %v1106
        %v1108 = vpop.f32.mrb[0].mxu0
        %v1109 = vpop.f32.mrb[0].mxu0
        %v1110 = vadd.f32 0.0, %v1109
        %v1111 = vpop.f32.mrb[0].mxu0
        %1112 = vmatprep.mubr.bf16.mxu0 0
        %1113 = vmatmul.mubr.bf16.gmra.mrb[0].mxu0 %v1005
        %v1114 = vpop.f32.mrb[0].mxu0
        %v1115 = vadd.f32 0.0, %v1114
        %v1116 = vpop.f32.mrb[0].mxu0
        %v1117 = vpop.f32.mrb[0].mxu0
        %v1118 = vadd.f32 0.0, %v1117
        %v1119 = vpop.f32.mrb[0].mxu0
        %1120 = vmatprep.mubr.bf16.mxu0 0
        %1121 = vmatmul.mubr.bf16.gmra.mrb[0].mxu0 %v1008
        %v1122 = vpop.f32.mrb[0].mxu0
        %v1123 = vadd.f32 0.0, %v1122
        %v1124 = vpop.f32.mrb[0].mxu0
        %v1125 = vpop.f32.mrb[0].mxu0
        %v1126 = vadd.f32 0.0, %v1125
        %v1127 = vpop.f32.mrb[0].mxu0
        %1128 = vmatprep.mubr.bf16.mxu0 0
        %1129 = vmatmul.mubr.bf16.gmra.mrb[0].mxu0 %v1011
        %v1130 = vpop.f32.mrb[0].mxu0
        %v1131 = vadd.f32 0.0, %v1130
        %v1132 = vpop.f32.mrb[0].mxu0
        %v1133 = vpop.f32.mrb[0].mxu0
        %v1134 = vadd.f32 0.0, %v1133
        %v1135 = vpop.f32.mrb[0].mxu0
        %1136 = vmatprep.mubr.bf16.mxu0 0
        %1137 = vmatmul.mubr.bf16.gmra.mrb[0].mxu0 %v1014
        %v1138 = vpop.f32.mrb[0].mxu0
        %v1139 = vadd.f32 0.0, %v1138
        %v1140 = vpop.f32.mrb[0].mxu0
        %v1141 = vpop.f32.mrb[0].mxu0
        %v1142 = vadd.f32 0.0, %v1141
        %v1143 = vpop.f32.mrb[0].mxu0
        %1144 = vdwg.mxu0
        %p1145 = scmp.eq.s32.totalorder %s23, 0
        // Predicated region
        $region49: #{tpu_custom_call.1} parent=39 // pred_check
          %p1146 = pneg %p1145
        $region50: #{tpu_custom_call.1} parent=39 // pred_check_branch
          %1148 = sbr.rel (%p1146) target = $region52
        $region51: #{tpu_custom_call.1} parent=39 // pred_region
          %vm1149 = vcmask 531456
          %1150 = vst.msk [vmem:[%s318] sm:$0xff] %vm1149, 0.0
          %1151 = vst.msk [vmem:[%s318 + $0x8] sm:$0xff] %vm1149, 0.0
          %1152 = vst.msk [vmem:[%s318 + $0x10] sm:$0xff] %vm1149, 0.0
          %1153 = vst.msk [vmem:[%s318 + $0x18] sm:$0xff] %vm1149, 0.0
          %1154 = vst.msk [vmem:[%s318 + $0x20] sm:$0xff] %vm1149, 0.0
          %1155 = vst.msk [vmem:[%s318 + $0x28] sm:$0xff] %vm1149, 0.0
          %1156 = vst.msk [vmem:[%s318 + $0x30] sm:$0xff] %vm1149, 0.0
          %1157 = vst.msk [vmem:[%s318 + $0x38] sm:$0xff] %vm1149, 0.0
          %1158 = vst.msk [vmem:[%s318 + $0x40] sm:$0xff] %vm1149, 0.0
          %1159 = vst.msk [vmem:[%s318 + $0x48] sm:$0xff] %vm1149, 0.0
          %1160 = vst.msk [vmem:[%s318 + $0x50] sm:$0xff] %vm1149, 0.0
          %1161 = vst.msk [vmem:[%s318 + $0x58] sm:$0xff] %vm1149, 0.0
          %1162 = vst.msk [vmem:[%s318 + $0x60] sm:$0xff] %vm1149, 0.0
          %1163 = vst.msk [vmem:[%s318 + $0x68] sm:$0xff] %vm1149, 0.0
          %1164 = vst.msk [vmem:[%s318 + $0x70] sm:$0xff] %vm1149, 0.0
          %1165 = vst.msk [vmem:[%s318 + $0x78] sm:$0xff] %vm1149, 0.0
          %1166 = vst.msk [vmem:[%s318 + $0x80] sm:$0xff] %vm1149, 0.0
          %1167 = vst.msk [vmem:[%s318 + $0x88] sm:$0xff] %vm1149, 0.0
          %1168 = vst.msk [vmem:[%s318 + $0x90] sm:$0xff] %vm1149, 0.0
          %1169 = vst.msk [vmem:[%s318 + $0x98] sm:$0xff] %vm1149, 0.0
          %1170 = vst.msk [vmem:[%s318 + $0xa0] sm:$0xff] %vm1149, 0.0
          %1171 = vst.msk [vmem:[%s318 + $0xa8] sm:$0xff] %vm1149, 0.0
          %1172 = vst.msk [vmem:[%s318 + $0xb0] sm:$0xff] %vm1149, 0.0
          %1173 = vst.msk [vmem:[%s318 + $0xb8] sm:$0xff] %vm1149, 0.0
        $region52: #{tpu_custom_call.1} parent=39 // pred_fallthru
          _
        %v1174 = vld [vmem:[%s318] sm:$0xff]
        %v1175 = vld [vmem:[%s318 + $0x8] sm:$0xff]
        %v1176 = vld [vmem:[%s318 + $0x10] sm:$0xff]
        %v1177 = vld [vmem:[%s318 + $0x18] sm:$0xff]
        %v1178 = vld [vmem:[%s318 + $0x20] sm:$0xff]
        %v1179 = vld [vmem:[%s318 + $0x28] sm:$0xff]
        %v1180 = vld [vmem:[%s318 + $0x30] sm:$0xff]
        %v1181 = vld [vmem:[%s318 + $0x38] sm:$0xff]
        %v1182 = vld [vmem:[%s318 + $0x40] sm:$0xff]
        %v1183 = vld [vmem:[%s318 + $0x48] sm:$0xff]
        %v1184 = vld [vmem:[%s318 + $0x50] sm:$0xff]
        %v1185 = vld [vmem:[%s318 + $0x58] sm:$0xff]
        %v1186 = vld [vmem:[%s318 + $0x60] sm:$0xff]
        %v1187 = vld [vmem:[%s318 + $0x68] sm:$0xff]
        %v1188 = vld [vmem:[%s318 + $0x70] sm:$0xff]
        %v1189 = vld [vmem:[%s318 + $0x78] sm:$0xff]
        %v1190 = vld [vmem:[%s318 + $0x80] sm:$0xff]
        %v1191 = vld [vmem:[%s318 + $0x88] sm:$0xff]
        %v1192 = vld [vmem:[%s318 + $0x90] sm:$0xff]
        %v1193 = vld [vmem:[%s318 + $0x98] sm:$0xff]
        %v1194 = vld [vmem:[%s318 + $0xa0] sm:$0xff]
        %v1195 = vld [vmem:[%s318 + $0xa8] sm:$0xff]
        %v1196 = vld [vmem:[%s318 + $0xb0] sm:$0xff]
        %v1197 = vld [vmem:[%s318 + $0xb8] sm:$0xff]
        %v1198 = vadd.f32 %v1174, %v1051
        %v1199 = vadd.f32 %v1175, %v1054
        %v1200 = vadd.f32 %v1176, %v1059
        %v1201 = vadd.f32 %v1177, %v1062
        %v1202 = vadd.f32 %v1178, %v1067
        %v1203 = vadd.f32 %v1179, %v1070
        %v1204 = vadd.f32 %v1180, %v1075
        %v1205 = vadd.f32 %v1181, %v1078
        %v1206 = vadd.f32 %v1182, %v1083
        %v1207 = vadd.f32 %v1183, %v1086
        %v1208 = vadd.f32 %v1184, %v1091
        %v1209 = vadd.f32 %v1185, %v1094
        %v1210 = vadd.f32 %v1186, %v1099
        %v1211 = vadd.f32 %v1187, %v1102
        %v1212 = vadd.f32 %v1188, %v1107
        %v1213 = vadd.f32 %v1189, %v1110
        %v1214 = vadd.f32 %v1190, %v1115
        %v1215 = vadd.f32 %v1191, %v1118
        %v1216 = vadd.f32 %v1192, %v1123
        %v1217 = vadd.f32 %v1193, %v1126
        %v1218 = vadd.f32 %v1194, %v1131
        %v1219 = vadd.f32 %v1195, %v1134
        %v1220 = vadd.f32 %v1196, %v1139
        %v1221 = vadd.f32 %v1197, %v1142
        %vm1222 = vcmask 531456
        %1223 = vst.msk [vmem:[%s318] sm:$0xff] %vm1222, %v1198
        %1224 = vst.msk [vmem:[%s318 + $0x8] sm:$0xff] %vm1222, %v1199
        %1225 = vst.msk [vmem:[%s318 + $0x10] sm:$0xff] %vm1222, %v1200
        %1226 = vst.msk [vmem:[%s318 + $0x18] sm:$0xff] %vm1222, %v1201
        %1227 = vst.msk [vmem:[%s318 + $0x20] sm:$0xff] %vm1222, %v1202
        %1228 = vst.msk [vmem:[%s318 + $0x28] sm:$0xff] %vm1222, %v1203
        %1229 = vst.msk [vmem:[%s318 + $0x30] sm:$0xff] %vm1222, %v1204
        %1230 = vst.msk [vmem:[%s318 + $0x38] sm:$0xff] %vm1222, %v1205
        %1231 = vst.msk [vmem:[%s318 + $0x40] sm:$0xff] %vm1222, %v1206
        %1232 = vst.msk [vmem:[%s318 + $0x48] sm:$0xff] %vm1222, %v1207
        %1233 = vst.msk [vmem:[%s318 + $0x50] sm:$0xff] %vm1222, %v1208
        %1234 = vst.msk [vmem:[%s318 + $0x58] sm:$0xff] %vm1222, %v1209
        %1235 = vst.msk [vmem:[%s318 + $0x60] sm:$0xff] %vm1222, %v1210
        %1236 = vst.msk [vmem:[%s318 + $0x68] sm:$0xff] %vm1222, %v1211
        %1237 = vst.msk [vmem:[%s318 + $0x70] sm:$0xff] %vm1222, %v1212
        %1238 = vst.msk [vmem:[%s318 + $0x78] sm:$0xff] %vm1222, %v1213
        %1239 = vst.msk [vmem:[%s318 + $0x80] sm:$0xff] %vm1222, %v1214
        %1240 = vst.msk [vmem:[%s318 + $0x88] sm:$0xff] %vm1222, %v1215
        %1241 = vst.msk [vmem:[%s318 + $0x90] sm:$0xff] %vm1222, %v1216
        %1242 = vst.msk [vmem:[%s318 + $0x98] sm:$0xff] %vm1222, %v1217
        %1243 = vst.msk [vmem:[%s318 + $0xa0] sm:$0xff] %vm1222, %v1218
        %1244 = vst.msk [vmem:[%s318 + $0xa8] sm:$0xff] %vm1222, %v1219
        %1245 = vst.msk [vmem:[%s318 + $0xb0] sm:$0xff] %vm1222, %v1220
        %1246 = vst.msk [vmem:[%s318 + $0xb8] sm:$0xff] %vm1222, %v1221
        %p1247 = scmp.lt.s32.totalorder %s22, 1
        %s1248 = scalar_select %p1247, %s22, 1
        %s1249 = smul.addr %s1248, 24
        %s1250 = smul.addr %s1249, 8
        %s1251 = scalar_lea.vmem %s5, %s1250
        // Predicated region
        $region53: #{tpu_custom_call.1} parent=39 // pred_check
          %p1252 = pneg %p167
        $region54: #{tpu_custom_call.1} parent=39 // pred_check_branch
          %1254 = sbr.rel (%p1252) target = $region56
        $region55: #{tpu_custom_call.1} parent=39 // pred_region
          _
        $region56: #{tpu_custom_call.1} parent=39 // pred_fallthru
          _
      $region40: #{tpu_custom_call.1} parent=5 // pred_fallthru
        _
      %p1255 = scmp.le.s32.totalorder 2, %s13
      // Predicated region
      $region57: #{tpu_custom_call.1} parent=5 // pred_check
        %p1256 = pneg %p1255
      $region58: #{tpu_custom_call.1} parent=5 // pred_check_branch
        %1258 = sbr.rel (%p1256) target = $region60
      $region59: #{tpu_custom_call.1} parent=5 // pred_region
        %s1259 = ssub.s32 %s13, 2
        // Predicated region
        $region61: #{tpu_custom_call.1} parent=59 // pred_check
          %p1260 = pneg %p173
        $region62: #{tpu_custom_call.1} parent=59 // pred_check_branch
          %1262 = sbr.rel (%p1260) target = $region64
        $region63: #{tpu_custom_call.1} parent=59 // pred_region
          %p1263 = scmp.lt.s32.totalorder %s24, 1
          %s1264 = scalar_select %p1263, %s24, 1
          %s1265 = smul.addr %s1264, 24
          %s1266 = smul.addr %s1265, 8
          %s1267 = scalar_lea.vmem %s5, %s1266
        $region64: #{tpu_custom_call.1} parent=59 // pred_fallthru
          _
      $region60: #{tpu_custom_call.1} parent=5 // pred_fallthru
        _
    $region6: #{tpu_custom_call.1} parent=1 // loop_footer
      %s17 = sadd.s32 1, %s13
    $region7: #{tpu_custom_call.1} parent=1 // loop_footer_branch
      %12 = sbr.rel target = $region3
    $region8: #{tpu_custom_call.1} parent=1 // loop_exit
      _
    %1268 = vsyncpa [#allocation3], 1
    %s1269 = scalar_lea.sflag [#allocation3], 1
    %1270 = vsyncpa %s1269, 1
    %1271 = vsyncpa [#allocation5], 1

</llo_original>
